<compile_context>
chip_gen: v7x
topology: tpu7x:2x2x1
jax: 0.10.0
libtpu: 0.0.40
codegen_flags: <defaults>
</compile_context>

<pallas_src>
import functools

import jax
import jax.numpy as jnp
from jax.experimental import pallas as pl
from jax.experimental.pallas import tpu as pltpu


def _cos_mse_kernel(e0_ref, e1_ref, lbl_ref, out_ref, acc_ref, *,
                    total_rows, tile_b, inner_tiles):
    """Per grid step: row-wise cosine similarity (torch.cosine_similarity semantics,
    eps=1e-8), squared error vs labels accumulated into a vector VMEM accumulator.
    Rows past the real batch (ragged last tile / fully-out-of-range split tiles) are
    discarded with a select so undefined block padding can never reach the loss.
    The final inner step reduces the accumulator once and writes this split's partial
    sum of squared errors as a lane-dense (1, 8, 128) splat."""
    s = pl.program_id(0)          # core split (CORE_PARALLEL on multi-TC chips)
    i = pl.program_id(1)          # sequential batch-tile index within the split

    @pl.when(i == 0)
    def _():
        acc_ref[...] = jnp.zeros_like(acc_ref)

    e0 = e0_ref[...].astype(jnp.float32)          # (tile_b, D)
    e1 = e1_ref[...].astype(jnp.float32)          # (tile_b, D)
    lbl = lbl_ref[...].astype(jnp.float32)        # (tile_b, 1)

    eps = jnp.float32(1e-8)
    dot = jnp.sum(e0 * e1, axis=-1, keepdims=True)        # (tile_b, 1)
    sq0 = jnp.sum(e0 * e0, axis=-1, keepdims=True)        # (tile_b, 1)
    sq1 = jnp.sum(e1 * e1, axis=-1, keepdims=True)        # (tile_b, 1)
    # torch.cosine_similarity: dot / (max(||e0||, eps) * max(||e1||, eps))
    # == dot * rsqrt(max(sq0, eps^2)) * rsqrt(max(sq1, eps^2)); rsqrt runs on the EUP.
    inv = jax.lax.rsqrt(jnp.maximum(sq0, eps * eps)) * jax.lax.rsqrt(jnp.maximum(sq1, eps * eps))
    cos = dot * inv

    # Mask rows past the real batch with a SELECT (not a multiply) so NaN/Inf in the
    # unspecified out-of-bounds region of the last block cannot propagate.
    row0 = (s * inner_tiles + i) * tile_b                  # logical row offset of this tile
    ridx = row0 + jax.lax.broadcasted_iota(jnp.int32, (tile_b, 1), 0)
    diff = jnp.where(ridx < total_rows, cos - lbl, jnp.float32(0.0))
    acc_ref[...] += diff * diff                            # vector accumulate, pure VPU

    @pl.when(i == pl.num_programs(1) - 1)
    def _():
        partial = jnp.sum(acc_ref[...])                    # single XLU reduce, last step only
        out_ref[...] = jnp.full((1, 8, 128), partial, dtype=jnp.float32)


def _round_up(x, m):
    return ((x + m - 1) // m) * m


def _vmem_capacity_bytes():
    """Per-TensorCore VMEM budget.  Clamped to 64 MiB so a chip-aggregate report on a
    2-TC v7x cannot oversubscribe the per-core 64 MiB (v5e/v6e have 128 MiB, but the
    2 MiB tile cap below never needs more than this anyway)."""
    cap = 64 * 1024 * 1024
    try:
        cap = int(pltpu.get_tpu_info().vmem_capacity_bytes)
    except Exception:
        pass
    return min(cap, 64 * 1024 * 1024)


def _num_tensorcores_per_chip():
    """Conservative detection: only report >1 if the TPU info object clearly exposes a
    per-chip TensorCore count (v7x). Unknown/ambiguous -> 1 (v5e/v6e behavior)."""
    try:
        info = pltpu.get_tpu_info()
        for attr in ("num_tensorcores_per_chip", "tensorcores_per_chip",
                     "cores_per_chip", "num_tensorcores"):
            v = getattr(info, attr, None)
            if v:
                return int(v)
    except Exception:
        pass
    return 1


def cosine_similarity_mse_loss(emb0, emb1, labels, *, tile_b=None, n_split=None):
    """emb0, emb1: (B, D); labels: (B,).  Returns scalar MSE(cos_sim(emb0, emb1), labels)."""
    B, D = emb0.shape
    assert emb1.shape == (B, D)
    assert labels.shape == (B,)

    itemsize = jnp.dtype(emb0.dtype).itemsize
    sub = {4: 8, 2: 16, 1: 32}.get(itemsize, 8)             # sublane packing multiple
    capacity = _vmem_capacity_bytes()

    # --- batch tile: cap each input buffer at ~2 MiB (roofline saturates there);
    #     bigger tiles only burn VMEM and lengthen pipeline fill/drain ---
    if tile_b is None:
        per_buf_bytes = 2 << 20
        max_rows = max(sub, ((per_buf_bytes // (D * itemsize)) // sub) * sub)
        tile_b = min(_round_up(B, sub), max_rows)
    tile_b = max(sub, _round_up(int(tile_b), sub))

    total_tiles = pl.cdiv(B, tile_b)

    # --- core split: only when a multi-TensorCore chip is positively detected ---
    # TODO(synk): v7x CORE_PARALLEL path relies on TpuInfo exposing a per-chip core
    # count; on chips where it doesn't, we conservatively fall back to a single core.
    if n_split is None:
        n_split = 2 if (_num_tensorcores_per_chip() >= 2 and total_tiles >= 2) else 1
    n_split = max(1, int(n_split))
    inner_tiles = pl.cdiv(total_tiles, n_split)

    # Embeddings are streamed directly from HBM (no padded copies). Only the tiny
    # labels array is padded so every label block is fully in-bounds.
    padded_B = n_split * inner_tiles * tile_b
    lbl = labels.astype(jnp.float32)
    if padded_B != B:
        lbl = jnp.pad(lbl, (0, padded_B - B))
    labels2d = lbl.reshape(padded_B, 1)

    last_tile = total_tiles - 1

    def emb_index(s, i):
        t = s * inner_tiles + i
        return (jnp.minimum(t, last_tile), 0)   # clamp fully-OOB split tiles (masked in-kernel)

    emb_spec = pl.BlockSpec((tile_b, D), emb_index)
    lbl_spec = pl.BlockSpec((tile_b, 1), lambda s, i: (s * inner_tiles + i, 0))

    # Explicit scoped-VMEM limit with ~16 MiB of compiler headroom.
    vmem_need = (4 * tile_b * D * itemsize        # 2 inputs x 2 pipeline buffers
                 + 2 * tile_b * 128 * 4           # label tiles (lane-padded) x 2 buffers
                 + tile_b * 128 * 4               # accumulator
                 + (1 << 20))
    vmem_limit = int(max(32 << 20, min(capacity - (16 << 20), 3 * vmem_need)))

    kernel = functools.partial(
        _cos_mse_kernel, total_rows=B, tile_b=tile_b, inner_tiles=inner_tiles)

    if n_split >= 2:
        dim_sems = (pltpu.CORE_PARALLEL, pltpu.ARBITRARY)
    else:
        dim_sems = ("arbitrary", "arbitrary")

    out = pl.pallas_call(
        kernel,
        out_shape=jax.ShapeDtypeStruct((n_split, 8, 128), jnp.float32),
        grid_spec=pltpu.PrefetchScalarGridSpec(
            num_scalar_prefetch=0,
            grid=(n_split, inner_tiles),
            in_specs=[emb_spec, emb_spec, lbl_spec],
            out_specs=pl.BlockSpec((1, 8, 128), lambda s, i: (s, 0, 0)),
            scratch_shapes=[pltpu.VMEM((tile_b, 1), jnp.float32)],
        ),
        compiler_params=pltpu.CompilerParams(
            dimension_semantics=dim_sems,
            vmem_limit_bytes=vmem_limit,
        ),
    )(emb0, emb1, labels2d)

    # Sum the per-core partial SSEs and take the mean over the real rows.
    return jnp.sum(out[:, 0, 0]) / jnp.float32(B)


def _reference_loss(emb0, emb1, labels):
    e0 = emb0.astype(jnp.float32)
    e1 = emb1.astype(jnp.float32)
    eps = 1e-8
    dot = jnp.sum(e0 * e1, axis=-1)
    n0 = jnp.maximum(jnp.linalg.norm(e0, axis=-1), eps)
    n1 = jnp.maximum(jnp.linalg.norm(e1, axis=-1), eps)
    return jnp.mean((dot / (n0 * n1) - labels.astype(jnp.float32)) ** 2)


if __name__ == "__main__":
    key = jax.random.PRNGKey(0)
    k_f0, k_f1, k_w, k_lbl = jax.random.split(key, 4)

    # Small shapes consistent with the forward: two "sentences" per pair,
    # batch=16 pairs, raw feature dim=32, embedding dim=32.
    # TODO(synk): for production narrow-D embeddings, pad/pack D to a multiple of
    # 128 upstream for full lane utilization (harmless here at demo size).
    B, F_IN, D = 16, 32, 32

    # Simulated sentence_features (two views) and deterministic "model":
    # a linear projection producing the sentence embeddings (plain-JAX glue).
    # Embeddings are kept in bf16 end-to-end (half the HBM traffic); the kernel
    # upcasts per tile.
    feats0 = jax.random.normal(k_f0, (B, F_IN), dtype=jnp.float32)
    feats1 = jax.random.normal(k_f1, (B, F_IN), dtype=jnp.float32)
    W = jax.random.normal(k_w, (F_IN, D), dtype=jnp.float32) * (1.0 / jnp.sqrt(F_IN))

    emb0 = (feats0 @ W).astype(jnp.bfloat16)   # sentence_embedding for sentence_features[0]
    emb1 = (feats1 @ W).astype(jnp.bfloat16)   # sentence_embedding for sentence_features[1]
    labels = jax.random.uniform(k_lbl, (B,), dtype=jnp.float32)

    # Main run: bf16 traffic, single tile covering the whole batch.
    loss = jax.block_until_ready(cosine_similarity_mse_loss(emb0, emb1, labels))
    ref = _reference_loss(emb0, emb1, labels)
    assert jnp.allclose(loss, ref, atol=1e-5, rtol=1e-5), (loss, ref)

    # Second run: ragged f32 batch (B=20) with a forced small tile -> cdiv grid,
    # partial last block handled purely by the in-kernel select mask (no emb padding),
    # multi-step accumulation.
    B2 = 20
    k_a, k_b, k_l = jax.random.split(jax.random.PRNGKey(1), 3)
    e0b = jax.random.normal(k_a, (B2, D), dtype=jnp.float32)
    e1b = jax.random.normal(k_b, (B2, D), dtype=jnp.float32)
    lblb = jax.random.uniform(k_l, (B2,), dtype=jnp.float32)
    loss2 = jax.block_until_ready(cosine_similarity_mse_loss(e0b, e1b, lblb, tile_b=8))
    ref2 = _reference_loss(e0b, e1b, lblb)
    assert jnp.allclose(loss2, ref2, atol=1e-5, rtol=1e-5), (loss2, ref2)

    # Third run: ragged bf16 batch (bf16 sublane packing -> tile_b multiple of 16).
    e0c = jax.random.normal(k_a, (B2, D), dtype=jnp.float32).astype(jnp.bfloat16)
    e1c = jax.random.normal(k_b, (B2, D), dtype=jnp.float32).astype(jnp.bfloat16)
    loss3 = jax.block_until_ready(cosine_similarity_mse_loss(e0c, e1c, lblb, tile_b=16))
    ref3 = _reference_loss(e0c, e1c, lblb)
    assert jnp.allclose(loss3, ref3, atol=1e-5, rtol=1e-5), (loss3, ref3)

    print("KERNEL_OK")
</pallas_src>

<mosaic_0001>
module attributes {stable_mosaic.version = 11 : i64} {
  func.func @_cos_mse_kernel(%arg0: i32, %arg1: i32, %arg2: memref<16x32xbf16, #tpu.memory_space<vmem>>, %arg3: memref<16x32xbf16, #tpu.memory_space<vmem>>, %arg4: memref<16x1xf32, #tpu.memory_space<vmem>>, %arg5: memref<1x8x128xf32, #tpu.memory_space<vmem>>, %arg6: memref<16x1xf32, #tpu.memory_space<vmem>>) attributes {dimension_semantics = [#tpu.dimension_semantics<arbitrary>, #tpu.dimension_semantics<arbitrary>], iteration_bounds = array<i64: 1, 1>, scalar_prefetch = 0 : i64, scratch_operands = 1 : i64, tpu.core_type = #tpu.core_type<tc>, window_params = [{transform_indices = @transform_0, window_bounds = array<i64: 16, 32>}, {transform_indices = @transform_1, window_bounds = array<i64: 16, 32>}, {transform_indices = @transform_2, window_bounds = array<i64: 16, 1>}, {transform_indices = @transform_3, window_bounds = array<i64: 1, 8, 128>}]} {
    %c0_i32 = arith.constant 0 : i32
    %0 = arith.cmpi eq, %arg1, %c0_i32 : i32
    %1 = arith.extui %0 : i1 to i32
    %c0_i32_0 = arith.constant 0 : i32
    %2 = arith.cmpi ne, %1, %c0_i32_0 : i32
    scf.if %2 {
      %cst_20 = arith.constant 0.000000e+00 : f32
      %45 = vector.broadcast %cst_20 : f32 to vector<16x1xf32>
      %c0_21 = arith.constant 0 : index
      %c0_22 = arith.constant 0 : index
      %46 = vector.load %arg6[%c0_21, %c0_22] : memref<16x1xf32, #tpu.memory_space<vmem>>, vector<16x1xf32>
      tpu.vector_store %arg6[%c0_21, %c0_22], %45 {strides = array<i32>} : memref<16x1xf32, #tpu.memory_space<vmem>>, vector<16x1xf32>,
    } else {
    }
    %c0 = arith.constant 0 : index
    %c0_1 = arith.constant 0 : index
    %3 = vector.load %arg2[%c0, %c0_1] : memref<16x32xbf16, #tpu.memory_space<vmem>>, vector<16x32xbf16>
    %4 = arith.extf %3 : vector<16x32xbf16> to vector<16x32xf32>
    %c0_2 = arith.constant 0 : index
    %c0_3 = arith.constant 0 : index
    %5 = vector.load %arg3[%c0_2, %c0_3] : memref<16x32xbf16, #tpu.memory_space<vmem>>, vector<16x32xbf16>
    %6 = arith.extf %5 : vector<16x32xbf16> to vector<16x32xf32>
    %c0_4 = arith.constant 0 : index
    %c0_5 = arith.constant 0 : index
    %7 = vector.load %arg4[%c0_4, %c0_5] : memref<16x1xf32, #tpu.memory_space<vmem>>, vector<16x1xf32>
    %8 = arith.mulf %4, %6 : vector<16x32xf32>
    %cst = arith.constant dense<0.000000e+00> : vector<16xf32>
    %9 = vector.multi_reduction <add>, %8, %cst [1] : vector<16x32xf32> to vector<16xf32>
    %10 = vector.shape_cast %9 : vector<16xf32> to vector<16x1xf32>
    %11 = arith.mulf %4, %4 : vector<16x32xf32>
    %cst_6 = arith.constant dense<0.000000e+00> : vector<16xf32>
    %12 = vector.multi_reduction <add>, %11, %cst_6 [1] : vector<16x32xf32> to vector<16xf32>
    %13 = vector.shape_cast %12 : vector<16xf32> to vector<16x1xf32>
    %14 = arith.mulf %6, %6 : vector<16x32xf32>
    %cst_7 = arith.constant dense<0.000000e+00> : vector<16xf32>
    %15 = vector.multi_reduction <add>, %14, %cst_7 [1] : vector<16x32xf32> to vector<16xf32>
    %16 = vector.shape_cast %15 : vector<16xf32> to vector<16x1xf32>
    %cst_8 = arith.constant 9.99999993E-9 : f32
    %cst_9 = arith.constant 9.99999993E-9 : f32
    %17 = arith.mulf %cst_8, %cst_9 : f32
    %18 = vector.broadcast %17 : f32 to vector<16x1xf32>
    %19 = arith.maximumf %13, %18 : vector<16x1xf32>
    %20 = math.rsqrt %19 : vector<16x1xf32>
    %cst_10 = arith.constant 9.99999993E-9 : f32
    %cst_11 = arith.constant 9.99999993E-9 : f32
    %21 = arith.mulf %cst_10, %cst_11 : f32
    %22 = vector.broadcast %21 : f32 to vector<16x1xf32>
    %23 = arith.maximumf %16, %22 : vector<16x1xf32>
    %24 = math.rsqrt %23 : vector<16x1xf32>
    %25 = arith.mulf %20, %24 : vector<16x1xf32>
    %26 = arith.mulf %10, %25 : vector<16x1xf32>
    %c1_i32 = arith.constant 1 : i32
    %27 = arith.muli %arg0, %c1_i32 : i32
    %28 = arith.addi %27, %arg1 : i32
    %c16_i32 = arith.constant 16 : i32
    %29 = arith.muli %28, %c16_i32 : i32
    %30 = tpu.iota {dimensions = array<i32: 0>} : vector<16x1xi32>
    %31 = vector.broadcast %29 : i32 to vector<16x1xi32>
    %32 = arith.addi %31, %30 : vector<16x1xi32>
    %c16_i32_12 = arith.constant 16 : i32
    %33 = vector.broadcast %c16_i32_12 : i32 to vector<16x1xi32>
    %34 = arith.cmpi slt, %32, %33 : vector<16x1xi32>
    %35 = arith.subf %26, %7 : vector<16x1xf32>
    %cst_13 = arith.constant 0.000000e+00 : f32
    %36 = vector.broadcast %cst_13 : f32 to vector<16x1xf32>
    %37 = arith.select %34, %35, %36 : vector<16x1xi1>, vector<16x1xf32>
    %c0_14 = arith.constant 0 : index
    %c0_15 = arith.constant 0 : index
    %38 = vector.load %arg6[%c0_14, %c0_15] : memref<16x1xf32, #tpu.memory_space<vmem>>, vector<16x1xf32>
    %39 = arith.mulf %37, %37 : vector<16x1xf32>
    %40 = arith.addf %38, %39 : vector<16x1xf32>
    %c0_16 = arith.constant 0 : index
    %c0_17 = arith.constant 0 : index
    %41 = vector.load %arg6[%c0_16, %c0_17] : memref<16x1xf32, #tpu.memory_space<vmem>>, vector<16x1xf32>
    tpu.vector_store %arg6[%c0_16, %c0_17], %40 {strides = array<i32>} : memref<16x1xf32, #tpu.memory_space<vmem>>, vector<16x1xf32>,
    %c0_i32_18 = arith.constant 0 : i32
    %42 = arith.cmpi eq, %arg1, %c0_i32_18 : i32
    %43 = arith.extui %42 : i1 to i32
    %c0_i32_19 = arith.constant 0 : i32
    %44 = arith.cmpi ne, %43, %c0_i32_19 : i32
    scf.if %44 {
      %c0_20 = arith.constant 0 : index
      %c0_21 = arith.constant 0 : index
      %45 = vector.load %arg6[%c0_20, %c0_21] : memref<16x1xf32, #tpu.memory_space<vmem>>, vector<16x1xf32>
      %46 = vector.shape_cast %45 : vector<16x1xf32> to vector<1x16x1xf32>
      %cst_22 = arith.constant dense<0.000000e+00> : vector<1xf32>
      %47 = vector.multi_reduction <add>, %46, %cst_22 [1, 2] : vector<1x16x1xf32> to vector<1xf32>
      %48 = vector.shape_cast %47 : vector<1xf32> to vector<1x1x1xf32>
      %49 = vector.extract %48[0, 0, 0] : f32 from vector<1x1x1xf32>
      %50 = vector.broadcast %49 : f32 to vector<1x8x128xf32>
      %c0_23 = arith.constant 0 : index
      %c0_24 = arith.constant 0 : index
      %c0_25 = arith.constant 0 : index
      %51 = vector.load %arg5[%c0_23, %c0_24, %c0_25] : memref<1x8x128xf32, #tpu.memory_space<vmem>>, vector<1x8x128xf32>
      tpu.vector_store %arg5[%c0_23, %c0_24, %c0_25], %50 {strides = array<i32>} : memref<1x8x128xf32, #tpu.memory_space<vmem>>, vector<1x8x128xf32>,
    } else {
    }
    return
  }
  func.func @transform_0(%arg0: i32, %arg1: i32) -> (i32, i32) {
    %c1_i32 = arith.constant 1 : i32
    %0 = arith.muli %arg0, %c1_i32 : i32
    %1 = arith.addi %0, %arg1 : i32
    %c0_i32 = arith.constant 0 : i32
    %2 = arith.minsi %1, %c0_i32 : i32
    %c0_i32_0 = arith.constant 0 : i32
    %c0_i32_1 = arith.constant 0 : i32
    return %2, %c0_i32_0 : i32, i32
  }
  func.func @transform_1(%arg0: i32, %arg1: i32) -> (i32, i32) {
    %c1_i32 = arith.constant 1 : i32
    %0 = arith.muli %arg0, %c1_i32 : i32
    %1 = arith.addi %0, %arg1 : i32
    %c0_i32 = arith.constant 0 : i32
    %2 = arith.minsi %1, %c0_i32 : i32
    %c0_i32_0 = arith.constant 0 : i32
    %c0_i32_1 = arith.constant 0 : i32
    return %2, %c0_i32_0 : i32, i32
  }
  func.func @transform_2(%arg0: i32, %arg1: i32) -> (i32, i32) {
    %c1_i32 = arith.constant 1 : i32
    %0 = arith.muli %arg0, %c1_i32 : i32
    %1 = arith.addi %0, %arg1 : i32
    %c0_i32 = arith.constant 0 : i32
    %c0_i32_0 = arith.constant 0 : i32
    return %1, %c0_i32 : i32, i32
  }
  func.func @transform_3(%arg0: i32, %arg1: i32) -> (i32, i32, i32) {
    %c0_i32 = arith.constant 0 : i32
    %c0_i32_0 = arith.constant 0 : i32
    %c0_i32_1 = arith.constant 0 : i32
    return %arg0, %c0_i32, %c0_i32_0 : i32, i32, i32
  }
}

</mosaic_0001>

<llo_original>
// kernel: tpu_custom_call.1
$region0: #{tpu_custom_call.1}
  #allocation0 [shape = 'u32[]', space=smem, size = 0x4, offset = 0x4, fixed_abs, tag = 'smem constant byte address 0x4 - core index']
  #allocation1 [shape = 'u32[144,128]{1,0:T(1,128)}', space=vmem, size = 0x12000, scoped, tag = 'internal scratch']
  #allocation2 [shape = 'f32[16,1]{1,0:T(8,128)}', space=vmem, size = 0x2000, scoped, tag = 'scratch operand']
  %s0 = inlined_call_operand.vmem [shape: bf16[16,32], index: 0, kind: input, shape index: {}]
  %s1 = inlined_call_operand.vmem [shape: bf16[16,32], index: 1, kind: input, shape index: {}]
  %s2 = inlined_call_operand.vmem [shape: f32[16,1], index: 2, kind: input, shape index: {}]
  %s3 = inlined_call_operand.hbm [shape: f32[1,8,128], index: 3, kind: output, shape index: {}]
  %s4 = sld [smem:[#allocation0]]
  $region30: #{tpu_custom_call.1} parent=0
    _
  %s6 = ssub.s32 1, %s4
  %s7 = scalar_select 0, %s6, %s4
  $region1: #{tpu_custom_call.1} parent=0
    #allocation3 [shape = 'u8[4096]{0}', space=vmem, size = 0x1000, scoped, tag = 'output window, operand 0, single buffered']
    #allocation4 [shape = 's32[1]{0}', space=sflag, size = 0x4, scoped, tag = 'scoped memory for tpu_custom_call.1']
    %8 = vsyncpa [#allocation4], 0
    // Predicated region
    $region2: #{tpu_custom_call.1} parent=1 // pred_check
      _
    $region3: #{tpu_custom_call.1} parent=1 // pred_check_branch
      %10 = sbr.rel (0) target = $region5
    $region4: #{tpu_custom_call.1} parent=1 // pred_region
      %s11 = sadd.s32 0, 0
      %p12 = scmp.lt.s32.totalorder %s11, 0
      %s13 = scalar_select %p12, %s11, 0
      %s14 = smul.u32 2, %s13
      %p15 = scmp.lt.s32.totalorder %s14, 1
      %s16 = scalar_select %p15, %s14, 1
      %s17 = smul.addr %s16, 4
      %s18 = scalar_lea.vmem %s0, %s17
      %s19 = sadd.s32 0, 0
      %p20 = scmp.lt.s32.totalorder %s19, 0
      %s21 = scalar_select %p20, %s19, 0
      %s22 = smul.u32 2, %s21
    $region5: #{tpu_custom_call.1} parent=1 // pred_fallthru
      _
    // Predicated region
    $region6: #{tpu_custom_call.1} parent=1 // pred_check
      _
    $region7: #{tpu_custom_call.1} parent=1 // pred_check_branch
      %24 = sbr.rel (0) target = $region9
    $region8: #{tpu_custom_call.1} parent=1 // pred_region
      %s25 = sadd.s32 0, 0
      %p26 = scmp.lt.s32.totalorder %s25, 0
      %s27 = scalar_select %p26, %s25, 0
      %s28 = smul.u32 2, %s27
      %p29 = scmp.lt.s32.totalorder %s28, 1
      %s30 = scalar_select %p29, %s28, 1
      %s31 = smul.addr %s30, 4
      %s32 = scalar_lea.vmem %s1, %s31
      %s33 = sadd.s32 0, 0
      %p34 = scmp.lt.s32.totalorder %s33, 0
      %s35 = scalar_select %p34, %s33, 0
      %s36 = smul.u32 2, %s35
    $region9: #{tpu_custom_call.1} parent=1 // pred_fallthru
      _
    // Predicated region
    $region10: #{tpu_custom_call.1} parent=1 // pred_check
      _
    $region11: #{tpu_custom_call.1} parent=1 // pred_check_branch
      %38 = sbr.rel (0) target = $region13
    $region12: #{tpu_custom_call.1} parent=1 // pred_region
      %s39 = sadd.s32 0, 0
      %s40 = smul.u32 2, %s39
      %p41 = scmp.lt.s32.totalorder %s40, 1
      %s42 = scalar_select %p41, %s40, 1
      %s43 = smul.addr %s42, 8
      %s44 = scalar_lea.vmem %s2, %s43
      %s45 = sadd.s32 0, 0
      %s46 = smul.u32 2, %s45
    $region13: #{tpu_custom_call.1} parent=1 // pred_fallthru
      _
    %s47 = sadd.s32 0, 0
    %p48 = scmp.lt.s32.totalorder %s47, 0
    %s49 = scalar_select %p48, %s47, 0
    %s50 = smul.u32 2, %s49
    %p51 = scmp.lt.s32.totalorder %s50, 1
    %s52 = scalar_select %p51, %s50, 1
    %s53 = smul.addr %s52, 4
    %s54 = scalar_lea.vmem %s0, %s53
    %s55 = sadd.s32 0, 0
    %p56 = scmp.lt.s32.totalorder %s55, 0
    %s57 = scalar_select %p56, %s55, 0
    %s58 = smul.u32 2, %s57
    %p59 = scmp.lt.s32.totalorder %s58, 1
    %s60 = scalar_select %p59, %s58, 1
    %s61 = smul.addr %s60, 4
    %s62 = scalar_lea.vmem %s1, %s61
    %s63 = sadd.s32 0, 0
    %s64 = smul.u32 2, %s63
    %p65 = scmp.lt.s32.totalorder %s64, 1
    %s66 = scalar_select %p65, %s64, 1
    %s67 = smul.addr %s66, 8
    %s68 = scalar_lea.vmem %s2, %s67
    %s69 = sadd.s32 0, 0
    %p70 = scmp.lt.s32.totalorder %s69, 0
    %s71 = scalar_select %p70, %s69, 0
    %s72 = smul.u32 2, %s71
    %p73 = scmp.lt.s32.totalorder %s72, 1
    %s74 = scalar_select %p73, %s72, 1
    %s75 = smul.addr %s74, 4
    %s76 = scalar_lea.vmem %s0, %s75
    %s77 = sadd.s32 0, 0
    %p78 = scmp.lt.s32.totalorder %s77, 0
    %s79 = scalar_select %p78, %s77, 0
    %s80 = smul.u32 2, %s79
    %s81 = sadd.s32 0, 0
    %p82 = scmp.lt.s32.totalorder %s81, 0
    %s83 = scalar_select %p82, %s81, 0
    %s84 = smul.u32 2, %s83
    %p85 = scmp.lt.s32.totalorder %s84, 1
    %s86 = scalar_select %p85, %s84, 1
    %s87 = smul.addr %s86, 4
    %s88 = scalar_lea.vmem %s1, %s87
    %s89 = sadd.s32 0, 0
    %p90 = scmp.lt.s32.totalorder %s89, 0
    %s91 = scalar_select %p90, %s89, 0
    %s92 = smul.u32 2, %s91
    %s93 = sadd.s32 0, 0
    %s94 = smul.u32 2, %s93
    %p95 = scmp.lt.s32.totalorder %s94, 1
    %s96 = scalar_select %p95, %s94, 1
    %s97 = smul.addr %s96, 8
    %s98 = scalar_lea.vmem %s2, %s97
    %s99 = sadd.s32 0, 0
    %s100 = smul.u32 2, %s99
    %p101 = scmp.eq.s32.totalorder 0, 0
    // Predicated region
    $region14: #{tpu_custom_call.1} parent=1 // pred_check
      %p102 = pneg %p101
    $region15: #{tpu_custom_call.1} parent=1 // pred_check_branch
      %104 = sbr.rel (%p102) target = $region17
    $region16: #{tpu_custom_call.1} parent=1 // pred_region
      %vm105 = vcmask 7168
      %106 = vst.msk [vmem:[#allocation2] sm:$0xff] %vm105, 0.0
      %107 = vst.msk [vmem:[#allocation2 + $0x8] sm:$0xff] %vm105, 0.0
    $region17: #{tpu_custom_call.1} parent=1 // pred_fallthru
      _
    %v108 = vld [vmem:[%s76] sm:$0xf]
    %v109 = vld [vmem:[%s76 + $0x4] sm:$0xf]
    %v110 = vunpack.c.l.bf16 %v108
    %v111 = vunpack.c.l.bf16 %v109
    %v112 = vld [vmem:[%s88] sm:$0xf]
    %v113 = vld [vmem:[%s88 + $0x4] sm:$0xf]
    %v114 = vunpack.c.l.bf16 %v112
    %v115 = vunpack.c.l.bf16 %v113
    %v116 = vld [vmem:[%s98] sm:$0xff]
    %v117 = vld [vmem:[%s98 + $0x8] sm:$0xff]
    %v118 = vmul.f32 %v110, %v114
    %v119 = vmul.f32 %v111, %v115
    %vm120 = vcmask 261120
    %v121 = vsel %vm120, %v118, 0.0
    %122 = vadd.xlane.f32.xlu0 %v121
    %v123 = vpop.xlane.xlu0 %122
    %v124 = vsel %vm120, %v119, 0.0
    %125 = vadd.xlane.f32.xlu0 %v124
    %v126 = vpop.xlane.xlu0 %125
    %v127 = vmul.f32 %v110, %v110
    %v128 = vmul.f32 %v111, %v111
    %v129 = vsel %vm120, %v127, 0.0
    %130 = vadd.xlane.f32.xlu0 %v129
    %v131 = vpop.xlane.xlu0 %130
    %v132 = vsel %vm120, %v128, 0.0
    %133 = vadd.xlane.f32.xlu0 %v132
    %v134 = vpop.xlane.xlu0 %133
    %v135 = vmul.f32 %v114, %v114
    %v136 = vmul.f32 %v115, %v115
    %v137 = vsel %vm120, %v135, 0.0
    %138 = vadd.xlane.f32.xlu0 %v137
    %v139 = vpop.xlane.xlu0 %138
    %v140 = vsel %vm120, %v136, 0.0
    %141 = vadd.xlane.f32.xlu0 %v140
    %v142 = vpop.xlane.xlu0 %141
    %v143 = vmax.f32 %v131, 1e-16
    %v144 = vmax.f32 %v134, 1e-16
    %v145 = vrsqrt.pop %v143
    %v146 = vrsqrt.pop %v144
    %v147 = vmax.f32 %v139, 1e-16
    %v148 = vmax.f32 %v142, 1e-16
    %v149 = vrsqrt.pop %v147
    %v150 = vrsqrt.pop %v148
    %v151 = vmul.f32 %v145, %v149
    %v152 = vmul.f32 %v146, %v150
    %v153 = vmul.f32 %v123, %v151
    %v154 = vmul.f32 %v126, %v152
    %s155 = sadd.s32 0, 0
    %s156 = smul.u32 %s155, 16
    %v157 = vlaneseq
    %v158 = vshrl.u32 %v157, 7
    %v159 = vadd.s32 %v158, 8
    %v160 = vstv %s156
    %v161 = vadd.s32 %v160, %v158
    %v162 = vadd.s32 %v160, %v159
    %vm163 = vcmp.lt.s32.totalorder %v161, 16
    %vm164 = vcmp.lt.s32.totalorder %v162, 16
    %v165 = vsub.f32 %v153, %v116
    %v166 = vsub.f32 %v154, %v117
    %v167 = vsel %vm163, %v165, 0.0
    %v168 = vsel %vm164, %v166, 0.0
    %v169 = vld [vmem:[#allocation2] sm:$0xff]
    %v170 = vld [vmem:[#allocation2 + $0x8] sm:$0xff]
    %v171 = vmul.f32 %v167, %v167
    %v172 = vmul.f32 %v168, %v168
    %v173 = vadd.f32 %v169, %v171
    %v174 = vadd.f32 %v170, %v172
    %vm175 = vcmask 7168
    %176 = vst.msk [vmem:[#allocation2] sm:$0xff] %vm175, %v173
    %177 = vst.msk [vmem:[#allocation2 + $0x8] sm:$0xff] %vm175, %v174
    // Predicated region
    $region18: #{tpu_custom_call.1} parent=1 // pred_check
      %p178 = pneg %p101
    $region19: #{tpu_custom_call.1} parent=1 // pred_check_branch
      %180 = sbr.rel (%p178) target = $region21
    $region20: #{tpu_custom_call.1} parent=1 // pred_region
      %v181 = vld [vmem:[#allocation2] sm:$0xff]
      %v182 = vld [vmem:[#allocation2 + $0x8] sm:$0xff]
      %v183 = vsel %vm175, %v181, 0.0
      %v184 = vsel %vm175, %v182, 0.0
      %v185 = vadd.f32 %v183, %v184
      %186 = vadd.xlane.f32.xlu0 %v185
      %v187 = vpop.xlane.xlu0 %186
      %v188 = vrot.slane %v187, 4
      %v189 = vadd.f32 %v187, %v188
      %v190 = vrot.slane %v189, 2
      %v191 = vadd.f32 %v189, %v190
      %v192 = vrot.slane %v191, 1
      %v193 = vadd.f32 %v191, %v192
      %s194 = vtos %v193
      %v195 = vstv %s194
      %196 = vst [vmem:[#allocation3] sm:$0xff] %v195
    $region21: #{tpu_custom_call.1} parent=1 // pred_fallthru
      _
    // Predicated region
    $region22: #{tpu_custom_call.1} parent=1 // pred_check
      _
    $region23: #{tpu_custom_call.1} parent=1 // pred_check_branch
      %198 = sbr.rel (0) target = $region25
    $region24: #{tpu_custom_call.1} parent=1 // pred_region
      %s200 = ssub.s32 128, 128
      %201 = vsyncadd [#allocation4], %s200
      %s203 = sshll.u32 [#allocation3], 4
      %s204 = int_to_ptr.vmem [resolvable:$true] %s203
      %206 = dma.vmem_to_hbm [thread:$0]  %s204, 128, %s3, [#allocation4]
    $region25: #{tpu_custom_call.1} parent=1 // pred_fallthru
      _
    // Predicated region
    $region26: #{tpu_custom_call.1} parent=1 // pred_check
      _
    $region27: #{tpu_custom_call.1} parent=1 // pred_check_branch
      %208 = sbr.rel (0) target = $region29
    $region28: #{tpu_custom_call.1} parent=1 // pred_region
      %209 = dma.done [#allocation4], 128
    $region29: #{tpu_custom_call.1} parent=1 // pred_fallthru
      _
    %210 = vsyncpa [#allocation4], 1

</llo_original>
